<compile_context>
chip_gen: v7x
topology: tpu7x:2x2x1
jax: 0.10.0
libtpu: 0.0.40
codegen_flags: <defaults>
</compile_context>

<pallas_src>
import functools

import jax
import jax.numpy as jnp
from jax import lax
from jax.experimental import pallas as pl
from jax.experimental.pallas import tpu as pltpu


def _focal_kernel(alpha_ref, logit_ref, tgt_ref, out_ref, *,
                  gamma, smooth, num_class, spatial, tile, n_inner):
    o = pl.program_id(1)
    i = pl.program_id(2)

    @pl.when(i == 0)
    def _():
        out_ref[...] = jnp.zeros_like(out_ref)

    x = logit_ref[...].astype(jnp.float32)      # (C, TILE): classes x pixels
    t = tgt_ref[...]                            # (1, TILE) int32

    # Softmax over the class (sublane) axis — lane-dense; 3 sublane reductions.
    m = jnp.max(x, axis=0, keepdims=True)       # (1, TILE)
    e = jnp.exp(x - m)                          # (C, TILE)
    s = jnp.sum(e, axis=0, keepdims=True)       # (1, TILE)

    # Numerator gathered at the target class via a one-hot on the class axis.
    classes = lax.broadcasted_iota(jnp.int32, x.shape, 0)       # (C, TILE)
    onehot = (classes == t).astype(jnp.float32)                 # (C, TILE)
    e_t = jnp.sum(e * onehot, axis=0, keepdims=True)            # (1, TILE)

    # alpha at the target class: SMEM scalars + VPU select chain (no XLU work,
    # no (C, TILE) multiply).
    # TODO(synk): for very large num_class a one-hot VMEM gather traces smaller;
    # focal-loss class counts are small so the unrolled chain wins.
    alpha_w = jnp.zeros(t.shape, jnp.float32)
    for c in range(num_class):
        alpha_w = jnp.where(t == c, alpha_ref[c], alpha_w)

    # p_t = softmax at target + smooth.  approx reciprocal runs on the EUP slot;
    # one Newton step restores ~f32 accuracy essentially for free.
    r = pl.reciprocal(s, approx=True)
    r = r * (2.0 - s * r)
    p_t = e_t * r + smooth
    logpt = jnp.log(p_t)

    one_minus = 1.0 - p_t
    g = float(gamma)
    if g == round(g) and 0 <= int(round(g)) <= 8:
        gi = int(round(g))
        focal = jnp.ones_like(one_minus) if gi == 0 else one_minus
        for _ in range(max(gi - 1, 0)):
            focal = focal * one_minus           # VPU multiplies, no EUP pow
    else:
        focal = jnp.power(one_minus, g)

    loss = -alpha_w * focal * logpt             # (1, TILE)

    # Mask padded lanes of the ragged last tile.  This is a select, so NaN/inf
    # garbage in padded lanes never reaches the reduction below.
    if (spatial % tile) != 0:
        lane = lax.broadcasted_iota(jnp.int32, t.shape, 1)
        pix = (o * n_inner + i) * tile + lane
        loss = jnp.where(pix < spatial, loss, 0.0)

    # One small reduction per step, accumulated into the resident output block.
    out_ref[...] += jnp.sum(loss, axis=1, keepdims=True)


def _pick_tile(num_class, spatial, logit_itemsize, vmem_budget_bytes):
    """Largest lane-aligned pixel tile whose VMEM working set fits the budget."""
    p_lanes = pl.cdiv(spatial, 128) * 128
    # Per-pixel VMEM estimate: double-buffered logit block + double-buffered
    # int32 target block + ~6 (C, tile) f32 temporaries + ~10 (1, tile) f32.
    per_pixel = (2 * num_class * logit_itemsize) + (2 * 4) \
        + (6 * num_class * 4) + (10 * 4)
    tile = (vmem_budget_bytes // per_pixel) // 128 * 128
    tile = max(128, min(int(tile), int(p_lanes), 256 * 1024))
    return tile


def multi_focal_loss(logit_nchw, target_nhw, alpha, *, gamma=2.0,
                     smooth=1e-4, vmem_budget_bytes=24 * 1024 * 1024):
    """Focal loss, 'mean' reduction. logit: (N,C,H,W) f32/bf16, target: (N,H,W) int."""
    N, C, H, W = logit_nchw.shape
    P = H * W
    R = N * P

    # Free reshapes only — no transpose pass through HBM.
    logit_ncp = logit_nchw.reshape(N, C, P)
    tgt_n1p = target_nhw.reshape(N, 1, P).astype(jnp.int32)
    alpha_vec = alpha.reshape(C).astype(jnp.float32)

    tile = _pick_tile(C, P, jnp.dtype(logit_nchw.dtype).itemsize,
                      vmem_budget_bytes)
    n_tiles = pl.cdiv(P, tile)
    # Split spatial tiles over a second parallel axis so v7x's second
    # TensorCore has work even when N == 1 (neutral on v5e/v6e: 1 TC).
    n_outer = 2 if (n_tiles >= 2 and n_tiles % 2 == 0) else 1
    n_inner = n_tiles // n_outer

    kernel = functools.partial(
        _focal_kernel, gamma=float(gamma), smooth=float(smooth),
        num_class=C, spatial=P, tile=tile, n_inner=n_inner)

    partials = pl.pallas_call(
        kernel,
        out_shape=jax.ShapeDtypeStruct((N, n_outer, 1, 1), jnp.float32),
        grid_spec=pltpu.PrefetchScalarGridSpec(
            num_scalar_prefetch=1,                      # alpha -> SMEM
            grid=(N, n_outer, n_inner),
            in_specs=[
                pl.BlockSpec((None, C, tile),
                             lambda b, o, i, a: (b, 0, o * n_inner + i)),
                pl.BlockSpec((None, 1, tile),
                             lambda b, o, i, a: (b, 0, o * n_inner + i)),
            ],
            out_specs=pl.BlockSpec((None, None, 1, 1),
                                   lambda b, o, i, a: (b, o, 0, 0)),
        ),
        compiler_params=pltpu.CompilerParams(
            dimension_semantics=("parallel", "parallel", "arbitrary"),
            vmem_limit_bytes=48 * 1024 * 1024),
    )(alpha_vec, logit_ncp, tgt_n1p)

    # Tiny epilogue: sum the per-(batch, spatial-chunk) partials, divide by R.
    return jnp.sum(partials) / jnp.float32(R)


def _reference(logit_nchw, target_nhw, alpha, gamma=2.0, smooth=1e-4):
    N, C, H, W = logit_nchw.shape
    rows = jnp.transpose(logit_nchw, (0, 2, 3, 1)).reshape(-1, C)
    t = target_nhw.reshape(-1)
    prob = jax.nn.softmax(rows.astype(jnp.float32), axis=-1)
    p_t = jnp.take_along_axis(prob, t[:, None], axis=1)[:, 0] + smooth
    a_w = alpha[t]
    loss = -a_w * jnp.power(1.0 - p_t, gamma) * jnp.log(p_t)
    return jnp.mean(loss)


if __name__ == "__main__":
    num_class = 4
    N, C, H, W = 2, num_class, 16, 16
    gamma = 2.0

    key = jax.random.PRNGKey(0)
    k_logit, k_tgt = jax.random.split(key)
    logit = jax.random.normal(k_logit, (N, C, H, W), dtype=jnp.float32)
    target = jax.random.randint(k_tgt, (N, H, W), 0, num_class, dtype=jnp.int32)

    # Deterministic parameters matching MultiFocalLoss(alpha=None):
    # alpha = ones(num_class) - 0.5
    alpha = jnp.ones((num_class,), dtype=jnp.float32) - 0.5

    # TODO(synk): only the default reduction='mean' path is implemented;
    # reduction='none' would skip the in-kernel accumulation and the divide.
    loss = multi_focal_loss(logit, target, alpha, gamma=gamma)
    loss = jax.block_until_ready(loss)

    ref = _reference(logit, target, alpha, gamma=gamma)
    assert jnp.allclose(loss, ref, rtol=1e-4, atol=1e-6), (loss, ref)

    print("KERNEL_OK")
</pallas_src>

<mosaic_0001>
module attributes {stable_mosaic.version = 11 : i64} {
  func.func @_focal_kernel(%arg0: i32, %arg1: i32, %arg2: i32, %arg3: memref<4xf32, #tpu.memory_space<smem>>, %arg4: memref<1x4x256xf32, #tpu.memory_space<vmem>>, %arg5: memref<1x1x256xi32, #tpu.memory_space<vmem>>, %arg6: memref<1x1x1x1xf32, #tpu.memory_space<vmem>>) attributes {dimension_semantics = [#tpu.dimension_semantics<parallel>, #tpu.dimension_semantics<parallel>, #tpu.dimension_semantics<arbitrary>], iteration_bounds = array<i64: 2, 1, 1>, scalar_prefetch = 1 : i64, scratch_operands = 0 : i64, tpu.core_type = #tpu.core_type<tc>, window_params = [{transform_indices = @transform_0, window_bounds = array<i64: 1, 4, 256>}, {transform_indices = @transform_1, window_bounds = array<i64: 1, 1, 256>}, {transform_indices = @transform_2, window_bounds = array<i64: 1, 1, 1, 1>}]} {
    %c0_i32 = arith.constant 0 : i32
    %0 = arith.cmpi eq, %arg2, %c0_i32 : i32
    %1 = arith.extui %0 : i1 to i32
    %c0_i32_0 = arith.constant 0 : i32
    %2 = arith.cmpi ne, %1, %c0_i32_0 : i32
    scf.if %2 {
      %cst_24 = arith.constant 0.000000e+00 : f32
      %67 = vector.broadcast %cst_24 : f32 to vector<1x1xf32>
      %c0_25 = arith.constant 0 : index
      %c0_26 = arith.constant 0 : index
      %c0_27 = arith.constant 0 : index
      %c0_28 = arith.constant 0 : index
      %68 = vector.load %arg6[%c0_25, %c0_26, %c0_27, %c0_28] : memref<1x1x1x1xf32, #tpu.memory_space<vmem>>, vector<1x1x1x1xf32>
      %69 = vector.shape_cast %68 : vector<1x1x1x1xf32> to vector<1x1xf32>
      %70 = vector.shape_cast %67 : vector<1x1xf32> to vector<1x1x1x1xf32>
      tpu.vector_store %arg6[%c0_25, %c0_26, %c0_27, %c0_28], %70 {strides = array<i32>} : memref<1x1x1x1xf32, #tpu.memory_space<vmem>>, vector<1x1x1x1xf32>,
    } else {
    }
    %c0 = arith.constant 0 : index
    %c0_1 = arith.constant 0 : index
    %c0_2 = arith.constant 0 : index
    %3 = vector.load %arg4[%c0, %c0_1, %c0_2] : memref<1x4x256xf32, #tpu.memory_space<vmem>>, vector<1x4x256xf32>
    %4 = vector.shape_cast %3 : vector<1x4x256xf32> to vector<4x256xf32>
    %c0_3 = arith.constant 0 : index
    %c0_4 = arith.constant 0 : index
    %c0_5 = arith.constant 0 : index
    %5 = vector.load %arg5[%c0_3, %c0_4, %c0_5] : memref<1x1x256xi32, #tpu.memory_space<vmem>>, vector<1x1x256xi32>
    %6 = vector.shape_cast %5 : vector<1x1x256xi32> to vector<1x256xi32>
    %cst = arith.constant dense<0xFF800000> : vector<256xf32>
    %7 = vector.multi_reduction <maximumf>, %4, %cst [0] : vector<4x256xf32> to vector<256xf32>
    %8 = vector.shape_cast %7 : vector<256xf32> to vector<1x256xf32>
    %9 = vector.broadcast %8 : vector<1x256xf32> to vector<4x256xf32>
    %10 = arith.subf %4, %9 : vector<4x256xf32>
    %11 = math.exp %10 : vector<4x256xf32>
    %cst_6 = arith.constant dense<0.000000e+00> : vector<256xf32>
    %12 = vector.multi_reduction <add>, %11, %cst_6 [0] : vector<4x256xf32> to vector<256xf32>
    %13 = vector.shape_cast %12 : vector<256xf32> to vector<1x256xf32>
    %14 = tpu.iota {dimensions = array<i32: 0>} : vector<4x256xi32>
    %15 = vector.broadcast %6 : vector<1x256xi32> to vector<4x256xi32>
    %16 = arith.cmpi eq, %14, %15 : vector<4x256xi32>
    %17 = arith.extui %16 : vector<4x256xi1> to vector<4x256xi32>
    %18 = arith.sitofp %17 : vector<4x256xi32> to vector<4x256xf32>
    %19 = arith.mulf %11, %18 : vector<4x256xf32>
    %cst_7 = arith.constant dense<0.000000e+00> : vector<256xf32>
    %20 = vector.multi_reduction <add>, %19, %cst_7 [0] : vector<4x256xf32> to vector<256xf32>
    %21 = vector.shape_cast %20 : vector<256xf32> to vector<1x256xf32>
    %cst_8 = arith.constant 0.000000e+00 : f32
    %22 = vector.broadcast %cst_8 : f32 to vector<1x256xf32>
    %c0_i32_9 = arith.constant 0 : i32
    %23 = vector.broadcast %c0_i32_9 : i32 to vector<1x256xi32>
    %24 = arith.cmpi eq, %6, %23 : vector<1x256xi32>
    %c0_10 = arith.constant 0 : index
    %25 = memref.load %arg3[%c0_10] : memref<4xf32, #tpu.memory_space<smem>>
    %26 = vector.broadcast %25 : f32 to vector<1x256xf32>
    %27 = arith.select %24, %26, %22 : vector<1x256xi1>, vector<1x256xf32>
    %c1_i32 = arith.constant 1 : i32
    %28 = vector.broadcast %c1_i32 : i32 to vector<1x256xi32>
    %29 = arith.cmpi eq, %6, %28 : vector<1x256xi32>
    %c1 = arith.constant 1 : index
    %30 = memref.load %arg3[%c1] : memref<4xf32, #tpu.memory_space<smem>>
    %31 = vector.broadcast %30 : f32 to vector<1x256xf32>
    %32 = arith.select %29, %31, %27 : vector<1x256xi1>, vector<1x256xf32>
    %c2_i32 = arith.constant 2 : i32
    %33 = vector.broadcast %c2_i32 : i32 to vector<1x256xi32>
    %34 = arith.cmpi eq, %6, %33 : vector<1x256xi32>
    %c2 = arith.constant 2 : index
    %35 = memref.load %arg3[%c2] : memref<4xf32, #tpu.memory_space<smem>>
    %36 = vector.broadcast %35 : f32 to vector<1x256xf32>
    %37 = arith.select %34, %36, %32 : vector<1x256xi1>, vector<1x256xf32>
    %c3_i32 = arith.constant 3 : i32
    %38 = vector.broadcast %c3_i32 : i32 to vector<1x256xi32>
    %39 = arith.cmpi eq, %6, %38 : vector<1x256xi32>
    %c3 = arith.constant 3 : index
    %40 = memref.load %arg3[%c3] : memref<4xf32, #tpu.memory_space<smem>>
    %41 = vector.broadcast %40 : f32 to vector<1x256xf32>
    %42 = arith.select %39, %41, %37 : vector<1x256xi1>, vector<1x256xf32>
    %43 = tpu.reciprocal %13 {approx = true} : vector<1x256xf32> -> vector<1x256xf32>
    %44 = arith.mulf %13, %43 : vector<1x256xf32>
    %cst_11 = arith.constant 2.000000e+00 : f32
    %45 = vector.broadcast %cst_11 : f32 to vector<1x256xf32>
    %46 = arith.subf %45, %44 : vector<1x256xf32>
    %47 = arith.mulf %43, %46 : vector<1x256xf32>
    %48 = arith.mulf %21, %47 : vector<1x256xf32>
    %cst_12 = arith.constant 9.99999974E-5 : f32
    %49 = vector.broadcast %cst_12 : f32 to vector<1x256xf32>
    %50 = arith.addf %48, %49 : vector<1x256xf32>
    %51 = math.log %50 : vector<1x256xf32>
    %cst_13 = arith.constant 1.000000e+00 : f32
    %52 = vector.broadcast %cst_13 : f32 to vector<1x256xf32>
    %53 = arith.subf %52, %50 : vector<1x256xf32>
    %54 = arith.mulf %53, %53 : vector<1x256xf32>
    %cst_14 = arith.constant 0.000000e+00 : f32
    %55 = vector.broadcast %cst_14 : f32 to vector<1x256xf32>
    %56 = arith.subf %55, %42 : vector<1x256xf32>
    %57 = arith.mulf %56, %54 : vector<1x256xf32>
    %58 = arith.mulf %57, %51 : vector<1x256xf32>
    %c0_15 = arith.constant 0 : index
    %c0_16 = arith.constant 0 : index
    %c0_17 = arith.constant 0 : index
    %c0_18 = arith.constant 0 : index
    %59 = vector.load %arg6[%c0_15, %c0_16, %c0_17, %c0_18] : memref<1x1x1x1xf32, #tpu.memory_space<vmem>>, vector<1x1x1x1xf32>
    %60 = vector.shape_cast %59 : vector<1x1x1x1xf32> to vector<1x1xf32>
    %cst_19 = arith.constant dense<0.000000e+00> : vector<1xf32>
    %61 = vector.multi_reduction <add>, %58, %cst_19 [1] : vector<1x256xf32> to vector<1xf32>
    %62 = vector.shape_cast %61 : vector<1xf32> to vector<1x1xf32>
    %63 = arith.addf %60, %62 : vector<1x1xf32>
    %c0_20 = arith.constant 0 : index
    %c0_21 = arith.constant 0 : index
    %c0_22 = arith.constant 0 : index
    %c0_23 = arith.constant 0 : index
    %64 = vector.load %arg6[%c0_20, %c0_21, %c0_22, %c0_23] : memref<1x1x1x1xf32, #tpu.memory_space<vmem>>, vector<1x1x1x1xf32>
    %65 = vector.shape_cast %64 : vector<1x1x1x1xf32> to vector<1x1xf32>
    %66 = vector.shape_cast %63 : vector<1x1xf32> to vector<1x1x1x1xf32>
    tpu.vector_store %arg6[%c0_20, %c0_21, %c0_22, %c0_23], %66 {strides = array<i32>} : memref<1x1x1x1xf32, #tpu.memory_space<vmem>>, vector<1x1x1x1xf32>,
    return
  }
  func.func @transform_0(%arg0: i32, %arg1: i32, %arg2: i32, %arg3: memref<4xf32, #tpu.memory_space<smem>>) -> (i32, i32, i32) {
    %c1_i32 = arith.constant 1 : i32
    %0 = arith.muli %arg1, %c1_i32 : i32
    %1 = arith.addi %0, %arg2 : i32
    %c0_i32 = arith.constant 0 : i32
    %c0_i32_0 = arith.constant 0 : i32
    return %arg0, %c0_i32, %1 : i32, i32, i32
  }
  func.func @transform_1(%arg0: i32, %arg1: i32, %arg2: i32, %arg3: memref<4xf32, #tpu.memory_space<smem>>) -> (i32, i32, i32) {
    %c1_i32 = arith.constant 1 : i32
    %0 = arith.muli %arg1, %c1_i32 : i32
    %1 = arith.addi %0, %arg2 : i32
    %c0_i32 = arith.constant 0 : i32
    %c0_i32_0 = arith.constant 0 : i32
    return %arg0, %c0_i32, %1 : i32, i32, i32
  }
  func.func @transform_2(%arg0: i32, %arg1: i32, %arg2: i32, %arg3: memref<4xf32, #tpu.memory_space<smem>>) -> (i32, i32, i32, i32) {
    %c0_i32 = arith.constant 0 : i32
    %c0_i32_0 = arith.constant 0 : i32
    %c0_i32_1 = arith.constant 0 : i32
    return %arg0, %arg1, %c0_i32, %c0_i32_0 : i32, i32, i32, i32
  }
}

</mosaic_0001>

<llo_original>
// kernel: tpu_custom_call.1
$region0: #{tpu_custom_call.1}
  #allocation0 [shape = 'u32[]', space=smem, size = 0x4, offset = 0x4, fixed_abs, tag = 'smem constant byte address 0x4 - core index']
  #allocation1 [shape = 'u32[144,128]{1,0:T(1,128)}', space=vmem, size = 0x12000, scoped, tag = 'internal scratch']
  #allocation2 [shape = 's32[1]{0}', space=sflag, size = 0x4, scoped, tag = 'scoped memory for tpu_custom_call.1']
  #allocation3 [shape = 'u8[512]{0}', space=smem, size = 0x200, scoped, tag = 'prefetched SMEM operand 0']
  %s0 = inlined_call_operand.hbm [shape: f32[4], index: 0, kind: input, shape index: {}]
  %s1 = inlined_call_operand.hbm [shape: f32[2,4,256], index: 1, kind: input, shape index: {}]
  %s2 = inlined_call_operand.vmem [shape: s32[2,1,256], index: 2, kind: input, shape index: {}]
  %s3 = inlined_call_operand.vmem [shape: f32[2,1,1,1], index: 3, kind: output, shape index: {}]
  %s4 = sld [smem:[#allocation0]]
  $region49: #{tpu_custom_call.1} parent=0
    _
  %s6 = ssub.s32 1, %s4
  %s7 = scalar_select 0, %s6, %s4
  %9 = dma.hbm_to_smem %s0, 16, [#allocation3], [#allocation2]
  %10 = dma.done [#allocation2], 16
  %11 = sfence
  $region1: #{tpu_custom_call.1} parent=0
    #allocation4 [shape = 'u8[8192]{0}', space=vmem, size = 0x2000, scoped, tag = 'input window, operand 1']
    #allocation5 [shape = 's32[2]{0}', space=sflag, size = 0x8, scoped, tag = 'scoped memory for tpu_custom_call.1']
    %12 = vsyncpa [#allocation5], 0
    %s13 = scalar_lea.sflag [#allocation5], 1
    %14 = vsyncpa %s13, 0
    loop: start=0, step=1, limit=4
    $region2: #{tpu_custom_call.1} parent=1 // loop_pre_header
      _
    $region3: #{tpu_custom_call.1} parent=1 // loop_header
      %s16 = sphi 0, %s20
      %p17 = scmp.ge.s32.totalorder %s16, 4
      %s23 = sphi 0, %s42
      %s24 = sphi 0, %s38
      %s25 = sphi 0, %s34
      %s26 = sphi 0, %s23
      %s27 = sphi 0, %s24
      %s28 = sphi 0, %s25
      %s29 = sphi 0, %s26
      %s30 = sphi 0, %s27
      %s31 = sphi 0, %s28
      %s49 = sphi 0, %s51
      %s52 = sphi 0, %s49
      %s53 = sphi 0, %s52
      %s69 = sphi 0, %s53
      %s79 = sphi 0, %s81
      %s82 = sphi 0, %s79
      %s83 = sphi 0, %s82
      %s99 = sphi 0, %s83
      %s107 = sphi 0, %s109
      %s110 = sphi 0, %s107
      %s111 = sphi 0, %s110
      %s127 = sphi 0, %s111
    $region4: #{tpu_custom_call.1} parent=1 // loop_header_branch
      %19 = sbr.rel (%p17) target = $region8
    $region5: #{tpu_custom_call.1} parent=1 // loop_body
      %s21 = ssub.s32 %s16, 1
      %s22 = ssub.s32 %s16, 2
      %s32 = sadd.s32 1, %s25
      %p33 = scmp.ge.s32.totalorder %s32, 1
      %s34 = scalar_select %p33, 0, %s32
      %s35 = sadd.s32 1, %s24
      %s36 = scalar_select %p33, %s35, %s24
      %p37 = scmp.ge.s32.totalorder %s36, 1
      %s38 = scalar_select %p37, 0, %s36
      %s39 = sadd.s32 1, %s23
      %s40 = scalar_select %p37, %s39, %s23
      %p41 = scmp.ge.s32.totalorder %s40, 2
      %s42 = scalar_select %p41, 0, %s40
      %s43 = sadd.s32 %s24, %s25
      %s44 = sadd.s32 %s38, %s34
      %s45 = ssub.s32 %s23, %s42
      %s46 = ssub.s32 %s43, %s44
      %s47 = sor.u32 %s45, %s46
      %p48 = scmp.eq.s32.totalorder %s47, 0
      %s50 = sadd.s32 %s49, 1
      %s51 = scalar_select %p48, %s49, %s50
      %p54 = pneg %p48
      %p55 = scmp.eq.s32.totalorder %s16, 1
      %p56 = por %p54, %p55
      %p57 = scmp.ne.s32.totalorder %s49, %s52
      %p58 = scmp.eq.s32.totalorder %s16, 0
      %p59 = por %p57, %p58
      %p60 = scmp.ne.s32.totalorder %s49, %s52
      %p61 = scmp.eq.s32.totalorder %s21, 1
      %p62 = por %p60, %p61
      %p63 = scmp.ne.s32.totalorder %s52, %s53
      %p64 = scmp.eq.s32.totalorder %s21, 0
      %p65 = por %p63, %p64
      %p66 = scmp.ne.s32.totalorder %s52, %s53
      %p67 = scmp.eq.s32.totalorder %s22, 1
      %p68 = por %p66, %p67
      %p70 = scmp.ne.s32.totalorder %s53, %s69
      %p71 = scmp.eq.s32.totalorder %s22, 0
      %p72 = por %p70, %p71
      %s73 = sadd.s32 %s24, %s25
      %s74 = sadd.s32 %s38, %s34
      %s75 = ssub.s32 %s23, %s42
      %s76 = ssub.s32 %s73, %s74
      %s77 = sor.u32 %s75, %s76
      %p78 = scmp.eq.s32.totalorder %s77, 0
      %s80 = sadd.s32 %s79, 1
      %s81 = scalar_select %p78, %s79, %s80
      %p84 = pneg %p78
      %p85 = scmp.eq.s32.totalorder %s16, 1
      %p86 = por %p84, %p85
      %p87 = scmp.ne.s32.totalorder %s79, %s82
      %p88 = scmp.eq.s32.totalorder %s16, 0
      %p89 = por %p87, %p88
      %p90 = scmp.ne.s32.totalorder %s79, %s82
      %p91 = scmp.eq.s32.totalorder %s21, 1
      %p92 = por %p90, %p91
      %p93 = scmp.ne.s32.totalorder %s82, %s83
      %p94 = scmp.eq.s32.totalorder %s21, 0
      %p95 = por %p93, %p94
      %p96 = scmp.ne.s32.totalorder %s82, %s83
      %p97 = scmp.eq.s32.totalorder %s22, 1
      %p98 = por %p96, %p97
      %p100 = scmp.ne.s32.totalorder %s83, %s99
      %p101 = scmp.eq.s32.totalorder %s22, 0
      %p102 = por %p100, %p101
      %s103 = ssub.s32 %s23, %s42
      %s104 = ssub.s32 %s24, %s38
      %s105 = sor.u32 %s103, %s104
      %p106 = scmp.eq.s32.totalorder %s105, 0
      %s108 = sadd.s32 %s107, 1
      %s109 = scalar_select %p106, %s107, %s108
      %p112 = pneg %p106
      %p113 = scmp.eq.s32.totalorder %s16, 1
      %p114 = por %p112, %p113
      %p115 = scmp.ne.s32.totalorder %s107, %s110
      %p116 = scmp.eq.s32.totalorder %s16, 0
      %p117 = por %p115, %p116
      %p118 = scmp.ne.s32.totalorder %s107, %s110
      %p119 = scmp.eq.s32.totalorder %s21, 1
      %p120 = por %p118, %p119
      %p121 = scmp.ne.s32.totalorder %s110, %s111
      %p122 = scmp.eq.s32.totalorder %s21, 0
      %p123 = por %p121, %p122
      %p124 = scmp.ne.s32.totalorder %s110, %s111
      %p125 = scmp.eq.s32.totalorder %s22, 1
      %p126 = por %p124, %p125
      %p128 = scmp.ne.s32.totalorder %s111, %s127
      %p129 = scmp.eq.s32.totalorder %s22, 0
      %p130 = por %p128, %p129
      %p131 = scmp.le.s32.totalorder 1, %s16
      %p132 = scmp.lt.s32.totalorder %s16, 3
      %p133 = pnand %p131, %p132
      %p134 = pneg %p133
      // Predicated region
      $region9: #{tpu_custom_call.1} parent=5 // pred_check
        _
      $region10: #{tpu_custom_call.1} parent=5 // pred_check_branch
        %136 = sbr.rel (%p133) target = $region12
      $region11: #{tpu_custom_call.1} parent=5 // pred_region
        %s137 = ssub.s32 %s16, 1
      $region12: #{tpu_custom_call.1} parent=5 // pred_fallthru
        _
      %p138 = scmp.lt.s32.totalorder %s16, 2
      // Predicated region
      $region13: #{tpu_custom_call.1} parent=5 // pred_check
        %p139 = pneg %p138
      $region14: #{tpu_custom_call.1} parent=5 // pred_check_branch
        %141 = sbr.rel (%p139) target = $region16
      $region15: #{tpu_custom_call.1} parent=5 // pred_region
        // Predicated region
        $region17: #{tpu_custom_call.1} parent=15 // pred_check
          %p142 = pneg %p59
        $region18: #{tpu_custom_call.1} parent=15 // pred_check_branch
          %144 = sbr.rel (%p142) target = $region20
        $region19: #{tpu_custom_call.1} parent=15 // pred_region
          %s145 = sand.u32 %s49, 1
          %s146 = scalar_lea.sflag [#allocation5], %s145
          %s147 = sand.u32 %s49, 1
          %s148 = smul.addr %s147, 8
          %s149 = scalar_lea.vmem [#allocation4], %s148
          %s150 = sadd.s32 %s24, %s25
          %s151 = smul.u32 2, %s150
          %s153 = ssub.s32 128, 128
          %154 = vsyncadd %s146, %s153
          %s155 = smul.addr %s23, 2
          %s156 = sadd.s32 %s151, %s155
          %s157 = smul.addr %s156, 64
          %s158 = scalar_lea.hbm %s1, %s157
          %s160 = sshll.u32 %s149, 4
          %s161 = int_to_ptr.vmem [resolvable:$true] %s160
          %163 = dma.hbm_to_vmem [thread:$0]  %s158, 128, %s161, %s146
        $region20: #{tpu_custom_call.1} parent=15 // pred_fallthru
          _
        // Predicated region
        $region21: #{tpu_custom_call.1} parent=15 // pred_check
          %p164 = pneg %p89
        $region22: #{tpu_custom_call.1} parent=15 // pred_check_branch
          %166 = sbr.rel (%p164) target = $region24
        $region23: #{tpu_custom_call.1} parent=15 // pred_region
          %s167 = sadd.s32 %s24, %s25
          %s168 = smul.u32 2, %s167
          %p169 = scmp.lt.s32.totalorder %s23, 1
          %s170 = scalar_select %p169, %s23, 1
          %p171 = scmp.lt.s32.totalorder %s168, 1
          %s172 = scalar_select %p171, %s168, 1
          %s173 = smul.addr %s170, 2
          %s174 = sadd.s32 %s172, %s173
          %s175 = scalar_lea.vmem %s2, %s174
          %s176 = sadd.s32 %s24, %s25
          %s177 = smul.u32 2, %s176
        $region24: #{tpu_custom_call.1} parent=15 // pred_fallthru
          _
      $region16: #{tpu_custom_call.1} parent=5 // pred_fallthru
        _
      %p178 = scmp.le.s32.totalorder 1, %s16
      %p179 = scmp.lt.s32.totalorder %s16, 3
      %p180 = pnand %p178, %p179
      %p181 = pneg %p180
      // Predicated region
      $region25: #{tpu_custom_call.1} parent=5 // pred_check
        _
      $region26: #{tpu_custom_call.1} parent=5 // pred_check_branch
        %183 = sbr.rel (%p180) target = $region28
      $region27: #{tpu_custom_call.1} parent=5 // pred_region
        %s184 = ssub.s32 %s16, 1
        %s185 = sand.u32 %s52, 1
        %s186 = scalar_lea.sflag [#allocation5], %s185
        %s187 = sand.u32 %s52, 1
        %s188 = smul.addr %s187, 8
        %s189 = scalar_lea.vmem [#allocation4], %s188
        // Predicated region
        $region29: #{tpu_custom_call.1} parent=27 // pred_check
          %p190 = pneg %p65
        $region30: #{tpu_custom_call.1} parent=27 // pred_check_branch
          %192 = sbr.rel (%p190) target = $region32
        $region31: #{tpu_custom_call.1} parent=27 // pred_region
          %193 = dma.done %s186, 128
        $region32: #{tpu_custom_call.1} parent=27 // pred_fallthru
          _
        %s194 = sand.u32 %s52, 1
        %s195 = scalar_lea.sflag [#allocation5], %s194
        %s196 = sand.u32 %s52, 1
        %s197 = smul.addr %s196, 8
        %s198 = scalar_lea.vmem [#allocation4], %s197
        %p199 = pneg %p65
        %p200 = pneg %p62
        %s201 = sadd.s32 %s27, %s28
        %s202 = smul.u32 2, %s201
        %p203 = scmp.lt.s32.totalorder %s26, 1
        %s204 = scalar_select %p203, %s26, 1
        %p205 = scmp.lt.s32.totalorder %s202, 1
        %s206 = scalar_select %p205, %s202, 1
        %s207 = smul.addr %s204, 2
        %s208 = sadd.s32 %s206, %s207
        %s209 = scalar_lea.vmem %s2, %s208
        %p210 = pneg %p95
        %p211 = pneg %p92
        %p212 = pneg %p123
        %p213 = pneg %p120
        %p214 = scmp.lt.s32.totalorder %s26, 1
        %s215 = scalar_select %p214, %s26, 1
        %p216 = scmp.lt.s32.totalorder %s27, 0
        %s217 = scalar_select %p216, %s27, 0
        %s218 = sadd.s32 %s217, %s215
        %s219 = scalar_lea.vmem %s3, %s218
        %s220 = sadd.s32 %s27, %s28
        %s221 = smul.u32 2, %s220
        %s222 = sadd.s32 %s27, %s28
        %s223 = smul.u32 2, %s222
        %p224 = scmp.lt.s32.totalorder %s26, 1
        %s225 = scalar_select %p224, %s26, 1
        %p226 = scmp.lt.s32.totalorder %s223, 1
        %s227 = scalar_select %p226, %s223, 1
        %s228 = smul.addr %s225, 2
        %s229 = sadd.s32 %s227, %s228
        %s230 = scalar_lea.vmem %s2, %s229
        %s231 = sadd.s32 %s27, %s28
        %s232 = smul.u32 2, %s231
        %p233 = scmp.lt.s32.totalorder %s26, 1
        %s234 = scalar_select %p233, %s26, 1
        %p235 = scmp.lt.s32.totalorder %s27, 0
        %s236 = scalar_select %p235, %s27, 0
        %s237 = sadd.s32 %s236, %s234
        %s238 = scalar_lea.vmem %s3, %s237
        %p239 = scmp.eq.s32.totalorder %s28, 0
        // Predicated region
        $region33: #{tpu_custom_call.1} parent=27 // pred_check
          %p240 = pneg %p239
        $region34: #{tpu_custom_call.1} parent=27 // pred_check_branch
          %242 = sbr.rel (%p240) target = $region36
        $region35: #{tpu_custom_call.1} parent=27 // pred_region
          %vm243 = vcmask 0
          %244 = vst.msk [vmem:[%s238] sm:$0x1] %vm243, 0.0
        $region36: #{tpu_custom_call.1} parent=27 // pred_fallthru
          _
        %v245 = vld [vmem:[%s189] sm:$0xff]
        %v246 = vld [vmem:[%s230] sm:$0x3]
        %v248 = vcombine.high %v245, %v245
        %vm250 = vcmask 1043456
        %v251 = vsel %vm250, %v245, -inf
        %v252 = vrot.slane %v251, 4
        %v253 = vmax.f32 %v251, %v252
        %v254 = vrot.slane %v253, 2
        %v255 = vmax.f32 %v253, %v254
        %v256 = vrot.slane %v255, 1
        %v257 = vmax.f32 %v255, %v256
        %v258 = vsel %vm250, %v248, -inf
        %v259 = vrot.slane %v258, 4
        %v260 = vmax.f32 %v258, %v259
        %v261 = vrot.slane %v260, 2
        %v262 = vmax.f32 %v260, %v261
        %v263 = vrot.slane %v262, 1
        %v264 = vmax.f32 %v262, %v263
        %v267 = vcombine.low %v257, %v264
        %v269 = vsub.f32 %v245, %v267
        %v270 = vmul.f32 %v269, 1.442695
        %v271 = vpow.pop %v270
        %v273 = vcombine.high %v271, %v271
        %v275 = vsel %vm250, %v271, 0.0
        %v276 = vrot.slane %v275, 4
        %v277 = vadd.f32 %v275, %v276
        %v278 = vrot.slane %v277, 2
        %v279 = vadd.f32 %v277, %v278
        %v280 = vrot.slane %v279, 1
        %v281 = vadd.f32 %v279, %v280
        %v282 = vsel %vm250, %v273, 0.0
        %v283 = vrot.slane %v282, 4
        %v284 = vadd.f32 %v282, %v283
        %v285 = vrot.slane %v284, 2
        %v286 = vadd.f32 %v284, %v285
        %v287 = vrot.slane %v286, 1
        %v288 = vadd.f32 %v286, %v287
        %v289 = vlaneseq
        %v290 = vshrl.u32 %v289, 7
        %v291 = vlaneseq
        %v292 = vshrl.u32 %v291, 7
        %v293 = vsub.s32 0, %v292
        %v294 = vrot.slane %v246, %v293
        %v295 = vlaneseq
        %v296 = vshrl.u32 %v295, 7
        %v297 = vsub.s32 1, %v296
        %v298 = vrot.slane %v246, %v297
        %vm299 = vcmp.eq.s32.totalorder %v290, %v294
        %vm300 = vcmp.eq.s32.totalorder %v290, %v298
        %v301 = vsel %vm299, 1, 0
        %v302 = vsel %vm300, 1, 0
        %v303 = vcvt.s32.f32 %v301
        %v304 = vcvt.s32.f32 %v302
        %v307 = vcombine.low %v303, %v304
        %v309 = vmul.f32 %v271, %v307
        %v311 = vcombine.high %v309, %v309
        %v313 = vsel %vm250, %v309, 0.0
        %v314 = vrot.slane %v313, 4
        %v315 = vadd.f32 %v313, %v314
        %v316 = vrot.slane %v315, 2
        %v317 = vadd.f32 %v315, %v316
        %v318 = vrot.slane %v317, 1
        %v319 = vadd.f32 %v317, %v318
        %v320 = vsel %vm250, %v311, 0.0
        %v321 = vrot.slane %v320, 4
        %v322 = vadd.f32 %v320, %v321
        %v323 = vrot.slane %v322, 2
        %v324 = vadd.f32 %v322, %v323
        %v325 = vrot.slane %v324, 1
        %v326 = vadd.f32 %v324, %v325
        %vm327 = vcmp.eq.s32.totalorder %v246, 0
        %s328 = sld [smem:[#allocation3]]
        %v329 = vstv %s328
        %v330 = vsel %vm327, %v329, 0.0
        %vm331 = vcmp.eq.s32.totalorder %v246, 1
        %s332 = sld [smem:[#allocation3 + $0x1]]
        %v333 = vstv %s332
        %v334 = vsel %vm331, %v333, %v330
        %vm335 = vcmp.eq.s32.totalorder %v246, 2
        %s336 = sld [smem:[#allocation3 + $0x2]]
        %v337 = vstv %s336
        %v338 = vsel %vm335, %v337, %v334
        %vm339 = vcmp.eq.s32.totalorder %v246, 3
        %s340 = sld [smem:[#allocation3 + $0x3]]
        %v341 = vstv %s340
        %v342 = vsel %vm339, %v341, %v338
        %v343 = vrcp.pop %v281
        %v344 = vrcp.pop %v288
        %v345 = vmul.f32 %v281, %v343
        %v346 = vmul.f32 %v288, %v344
        %v347 = vsub.f32 2.0, %v345
        %v348 = vsub.f32 2.0, %v346
        %v349 = vmul.f32 %v343, %v347
        %v350 = vmul.f32 %v344, %v348
        %v351 = vmul.f32 %v319, %v349
        %v352 = vmul.f32 %v326, %v350
        %v353 = vadd.f32 %v351, 0.0001
        %v354 = vadd.f32 %v352, 0.0001
        %v355 = vlog2.pop %v353
        %v356 = vmul.f32 %v355, 0.6931472
        %v357 = vlog2.pop %v354
        %v358 = vmul.f32 %v357, 0.6931472
        %v359 = vsub.f32 1.0, %v353
        %v360 = vsub.f32 1.0, %v354
        %v361 = vmul.f32 %v359, %v359
        %v362 = vmul.f32 %v360, %v360
        %v363 = vsub.f32 0.0, %v342
        %v366 = vcombine.low %v361, %v362
        %v368 = vunpack.c.l.s4 1966171168
        %v369 = vunpack.c.0.s8 %v368
        %v370 = vlaneseq
        %v371 = vshrl.u32 %v370, 7
        %v372 = vsub.s32 %v369, %v371
        %v373 = vrot.slane %v366, %v372
        %v375 = vunpack.c.l.s4 1966171168
        %v376 = vunpack.c.0.s8 %v375
        %v377 = vlaneseq
        %v378 = vshrl.u32 %v377, 7
        %v379 = vsub.s32 %v376, %v378
        %v380 = vrot.slane %v373, %v379
        %v382 = vmul.f32 %v363, %v380
        %v385 = vcombine.low %v356, %v358
        %v387 = vunpack.c.l.s4 1966171168
        %v388 = vunpack.c.0.s8 %v387
        %v389 = vlaneseq
        %v390 = vshrl.u32 %v389, 7
        %v391 = vsub.s32 %v388, %v390
        %v392 = vrot.slane %v385, %v391
        %v394 = vunpack.c.l.s4 1966171168
        %v395 = vunpack.c.0.s8 %v394
        %v396 = vlaneseq
        %v397 = vshrl.u32 %v396, 7
        %v398 = vsub.s32 %v395, %v397
        %v399 = vrot.slane %v392, %v398
        %v401 = vmul.f32 %v382, %v399
        %v402 = vld [vmem:[%s238] sm:$0x1]
        %v404 = vlaneseq
        %v405 = vshrl.u32 %v404, 7
        %v406 = vsub.s32 0, %v405
        %v407 = vrot.slane %v401, %v406
        %v408 = vlaneseq
        %v409 = vshrl.u32 %v408, 7
        %v410 = vsub.s32 1, %v409
        %v411 = vrot.slane %v401, %v410
        %vm414 = vcmask 1040384
        %v415 = vsel %vm414, %v407, 0.0
        %v416 = vsel %vm414, %v411, 0.0
        %v417 = vadd.f32 %v415, %v416
        %418 = vadd.xlane.f32.xlu0 %v417
        %v419 = vpop.xlane.xlu0 %418
        %v420 = vadd.f32 %v402, %v419
        %vm421 = vcmask 0
        %422 = vst.msk [vmem:[%s238] sm:$0x1] %vm421, %v420
        %p423 = scmp.lt.s32.totalorder %s26, 1
        %s424 = scalar_select %p423, %s26, 1
        %p425 = scmp.lt.s32.totalorder %s27, 0
        %s426 = scalar_select %p425, %s27, 0
        %s427 = sadd.s32 %s426, %s424
        %s428 = scalar_lea.vmem %s3, %s427
        // Predicated region
        $region37: #{tpu_custom_call.1} parent=27 // pred_check
          %p429 = pneg %p120
        $region38: #{tpu_custom_call.1} parent=27 // pred_check_branch
          %431 = sbr.rel (%p429) target = $region40
        $region39: #{tpu_custom_call.1} parent=27 // pred_region
          _
        $region40: #{tpu_custom_call.1} parent=27 // pred_fallthru
          _
      $region28: #{tpu_custom_call.1} parent=5 // pred_fallthru
        _
      %p432 = scmp.le.s32.totalorder 2, %s16
      // Predicated region
      $region41: #{tpu_custom_call.1} parent=5 // pred_check
        %p433 = pneg %p432
      $region42: #{tpu_custom_call.1} parent=5 // pred_check_branch
        %435 = sbr.rel (%p433) target = $region44
      $region43: #{tpu_custom_call.1} parent=5 // pred_region
        %s436 = ssub.s32 %s16, 2
        // Predicated region
        $region45: #{tpu_custom_call.1} parent=43 // pred_check
          %p437 = pneg %p126
        $region46: #{tpu_custom_call.1} parent=43 // pred_check_branch
          %439 = sbr.rel (%p437) target = $region48
        $region47: #{tpu_custom_call.1} parent=43 // pred_region
          %p440 = scmp.lt.s32.totalorder %s29, 1
          %s441 = scalar_select %p440, %s29, 1
          %p442 = scmp.lt.s32.totalorder %s30, 0
          %s443 = scalar_select %p442, %s30, 0
          %s444 = sadd.s32 %s443, %s441
          %s445 = scalar_lea.vmem %s3, %s444
        $region48: #{tpu_custom_call.1} parent=43 // pred_fallthru
          _
      $region44: #{tpu_custom_call.1} parent=5 // pred_fallthru
        _
    $region6: #{tpu_custom_call.1} parent=1 // loop_footer
      %s20 = sadd.s32 1, %s16
    $region7: #{tpu_custom_call.1} parent=1 // loop_footer_branch
      %15 = sbr.rel target = $region3
    $region8: #{tpu_custom_call.1} parent=1 // loop_exit
      _
    %446 = vsyncpa [#allocation5], 1
    %s447 = scalar_lea.sflag [#allocation5], 1
    %448 = vsyncpa %s447, 1

</llo_original>
